<compile_context>
chip_gen: v5e
topology: v5e:2x2
jax: 0.10.0
libtpu: 0.0.40
codegen_flags: <defaults>
</compile_context>

<pallas_src>
import numpy as np
import jax
import jax.numpy as jnp
from jax.experimental import pallas as pl
from jax.experimental.pallas import tpu as pltpu

nusc_class_frequencies = np.array([
    1163161, 2309034, 188743, 2997643, 20317180, 852476, 243808, 2457947,
    497017, 2731022, 7224789, 214411435, 5565043, 63191967, 76098082,
    128860031, 141625221, 2307405309])

NUM_CLASSES = 18
SEM_DIM = NUM_CLASSES - 1  # 17 semantic logit channels


# ----------------------------------------------------------------------------
# Pallas kernel: class-weighted cross-entropy, NCHW-native layout.
# Grid: (camera groups [parallel], pixel tiles [arbitrary]).
# Block layout per step:
#   logits: (G, 17, TP)  classes on sublanes, pixels on lanes (no transpose)
#   labels: (G, 1, TP) i32  (mask already folded in: masked pixels == 17)
#   w:      (17, 1) f32
#   out:    (G, 128) f32, resident across pixel tiles; lane0=num, lane1=den
# PyTorch CrossEntropyLoss(weight=w, reduction='mean') per camera == num/den.
# ----------------------------------------------------------------------------
def _weighted_ce_kernel(logits_ref, labels_ref, w_ref, out_ref):
    t = pl.program_id(1)

    @pl.when(t == 0)
    def _init():
        out_ref[...] = jnp.zeros_like(out_ref)

    g, c, tp = logits_ref.shape
    w = w_ref[...]                                             # (C, 1) f32
    cls_ids = jax.lax.broadcasted_iota(jnp.int32, (c, tp), 0)   # class iota
    row_ids = jax.lax.broadcasted_iota(jnp.int32, out_ref.shape, 0)
    lane_ids = jax.lax.broadcasted_iota(jnp.int32, out_ref.shape, 1)

    packed = jnp.zeros(out_ref.shape, jnp.float32)
    # Static unroll over the (small, <=8) camera group: keeps all heavy math
    # rank-2 with classes on sublanes / pixels lane-dense.
    for gi in range(g):
        x = logits_ref[gi].astype(jnp.float32)                 # (C, TP)
        lab = labels_ref[gi]                                   # (1, TP) i32

        # numerically stable log-sum-exp over the class (sublane) axis
        m = jnp.max(x, axis=0, keepdims=True)                  # (1, TP)
        lse = m + jnp.log(jnp.sum(jnp.exp(x - m), axis=0, keepdims=True))

        # fused one-hot * class-weight select.
        # NOTE: labels == 17 (masked-out / "free" class) match no channel and
        # silently contribute 0 to num and den (implicit ignore_index).
        ow = jnp.where(lab == cls_ids, w, 0.0)                 # (C, TP)
        wx = jnp.sum(ow * x, axis=0, keepdims=True)            # w_y * x_y
        den_pix = jnp.sum(ow, axis=0, keepdims=True)           # w_y
        num_pix = lse * den_pix - wx                           # w_y * nll

        num_s = jnp.sum(num_pix)                               # scalar
        den_s = jnp.sum(den_pix)                               # scalar

        at_row = row_ids == gi
        packed = (packed
                  + jnp.where(at_row & (lane_ids == 0), num_s, 0.0)
                  + jnp.where(at_row & (lane_ids == 1), den_s, 0.0))

    out_ref[...] += packed


def _choose_tiles(n, c, p, logits_itemsize):
    """Pick (cameras per grid step, pixels per tile)."""
    # Pixel tile (lane axis): equal to P, or a multiple of 128 dividing P.
    MAX_TP = 8192
    if p <= MAX_TP:
        tp = p
    else:
        tp = p  # fallback: whole pixel row (still satisfies the constraint)
        for cand in range(MAX_TP - (MAX_TP % 128), 0, -128):
            if p % cand == 0:
                tp = cand
                break
    # Cameras per step: amortize per-step overhead (~0.35us) for tiny views,
    # but keep >= 2 steps on the parallel axis (v7x has 2 TensorCores) and
    # keep the per-step logits tile comfortably inside scoped VMEM on every
    # generation (double-buffered by the BlockSpec pipeline).
    MAX_G = 8
    MAX_TILE_BYTES = 2 * 1024 * 1024
    g = 1
    for cand in range(1, min(n, MAX_G) + 1):
        if n % cand:
            continue
        if n // cand < 2 and n >= 2:
            continue
        if cand * c * tp * logits_itemsize > MAX_TILE_BYTES:
            continue
        g = cand
    return g, tp


def weighted_ce_per_camera(logits, labels, class_weights,
                           cams_per_step=None, pixels_per_tile=None):
    """logits: (N, C, P) float (f32 or bf16, NCHW-native);
    labels: (N, 1, P) i32 with masked-out pixels set to C (sentinel);
    class_weights: (C, 1) f32
    -> (num, den) each of shape (N,) f32 (per-camera weighted CE sum / weight
    sum; PyTorch CrossEntropyLoss(weight, reduction='mean') == num/den)."""
    n, c, p = logits.shape
    g, tp = _choose_tiles(n, c, p, logits.dtype.itemsize)
    if cams_per_step is not None:
        g = cams_per_step
    if pixels_per_tile is not None:
        tp = pixels_per_tile
    assert n % g == 0 and p % tp == 0
    n_groups = n // g
    n_ptiles = p // tp

    out = pl.pallas_call(
        _weighted_ce_kernel,
        out_shape=jax.ShapeDtypeStruct((n_groups, g, 128), jnp.float32),
        grid_spec=pltpu.PrefetchScalarGridSpec(
            num_scalar_prefetch=0,
            grid=(n_groups, n_ptiles),
            in_specs=[
                pl.BlockSpec((g, c, tp), lambda i, t: (i, 0, t)),
                pl.BlockSpec((g, 1, tp), lambda i, t: (i, 0, t)),
                # class weights: tiny (17,1) block, constant index; kept as a
                # streamed input (68 B) for lowering robustness.
                pl.BlockSpec((c, 1), lambda i, t: (0, 0)),
            ],
            out_specs=pl.BlockSpec((None, g, 128), lambda i, t: (i, 0, 0)),
        ),
        compiler_params=pltpu.CompilerParams(
            dimension_semantics=("parallel", "arbitrary")),
    )(logits, labels, class_weights)

    num = out[:, :, 0].reshape(n)
    den = out[:, :, 1].reshape(n)
    return num, den


# ----------------------------------------------------------------------------
# Plain-JAX glue (nearest resize == torch.nn.functional.interpolate 'nearest')
# ----------------------------------------------------------------------------
def nearest_resize(img, out_h, out_w):
    in_h, in_w = img.shape[-2], img.shape[-1]
    rows = (jnp.arange(out_h) * in_h) // out_h
    cols = (jnp.arange(out_w) * in_w) // out_w
    return img[..., rows[:, None], cols[None, :]]


class GausSplatingHeadPallas:
    def __init__(self, point_cloud_range, voxel_size, voxel_feature_dim=17,
                 num_classes=18, render_img_shape=(16, 16),
                 balance_cls_weight=True, gaussian_sem_weight=1.0):
        self.voxel_size = voxel_size
        self.xyz_min = np.asarray(point_cloud_range[:3], np.float32)
        self.xyz_max = np.asarray(point_cloud_range[3:], np.float32)
        self.voxel_feature_dim = voxel_feature_dim
        self.num_classes = num_classes
        self.render_image_height, self.render_image_width = render_img_shape
        self.gaussian_sem_weight = gaussian_sem_weight
        if balance_cls_weight:
            self.class_weights = jnp.asarray(
                1.0 / np.log(nusc_class_frequencies[:17] + 0.001),
                dtype=jnp.float32)
        else:
            self.class_weights = jnp.ones((17,), jnp.float32) / 17.0
        # TODO(synk): pc_xyz / scales (distCUDA2, scipy KDTree) / rots only feed
        # the CUDA diff-gaussian rasterizer (render_feature_map) which has no
        # Pallas equivalent, so they are not materialized here.

    def forward(self, voxel_feats, opacity, rendered_sem_maps, gt_sem,
                sem_label_mask):
        """voxel_feats: (B, Nvox, 17), opacity: (B, Nvox, 1),
        rendered_sem_maps: (B, Ncam, 17, H, W)  (stand-in for render_feature_map
        output, f32 or bf16), gt_sem/sem_label_mask: (B, Ncam, H0, W0)."""
        b, ncam = rendered_sem_maps.shape[:2]
        h, w = self.render_image_height, self.render_image_width

        # Computed for parity with the torch forward; only consumed by the
        # untranslatable rasterizer so unused downstream here.
        _opacity_mask = opacity.reshape(b, -1) > 0.1
        _vox_flat = voxel_feats.reshape(b, -1, self.voxel_feature_dim)

        # NCHW-native: pure reshape, no transpose -- classes stay on sublanes,
        # pixels on lanes. (kernel upcasts bf16 -> f32 internally)
        logits = rendered_sem_maps.reshape(b * ncam, SEM_DIM, h * w)

        gt = nearest_resize(gt_sem, h, w).astype(jnp.int32)
        msk = nearest_resize(sem_label_mask, h, w) != 0
        # Fold the pixel mask into the labels: masked-out pixels get the
        # sentinel class SEM_DIM which matches no logit channel, so they
        # contribute 0 to both CE numerator and weight denominator.
        gt = jnp.where(msk, gt, SEM_DIM)
        gt = gt.reshape(b * ncam, 1, h * w)

        num, den = weighted_ce_per_camera(
            logits, gt, self.class_weights.reshape(SEM_DIM, 1))

        # NOTE: a fully-masked camera yields den == 0 -> NaN, matching the
        # PyTorch module's behaviour (empty masked_select into CE).
        loss_per_cam = num / den                       # CE mean per camera
        loss_per_batch = loss_per_cam.reshape(b, ncam).sum(-1) / ncam
        loss_sem = loss_per_batch.sum() / b * self.gaussian_sem_weight
        return {'render_sem_loss': loss_sem}


# ----------------------------------------------------------------------------
# Pure-numpy reference (mirrors the PyTorch loop) for correctness checking.
# ----------------------------------------------------------------------------
def _nearest_np(img, out_h, out_w):
    in_h, in_w = img.shape[-2], img.shape[-1]
    rows = (np.arange(out_h) * in_h) // out_h
    cols = (np.arange(out_w) * in_w) // out_w
    return img[..., rows[:, None], cols[None, :]]


def _ref_forward(rendered, gt_sem, sem_mask, cw, h, w, weight):
    b, ncam = rendered.shape[:2]
    total = 0.0
    for bi in range(b):
        cam_sum = 0.0
        for ci in range(ncam):
            x = np.transpose(rendered[bi, ci], (1, 2, 0)).reshape(-1, SEM_DIM)
            x = x.astype(np.float64)
            g = _nearest_np(gt_sem[bi, ci], h, w).reshape(-1).astype(np.int64)
            m = _nearest_np(sem_mask[bi, ci], h, w).reshape(-1) != 0
            xs, gs = x[m], g[m]
            mx = xs.max(-1, keepdims=True)
            lse = mx[:, 0] + np.log(np.exp(xs - mx).sum(-1))
            nll = lse - xs[np.arange(xs.shape[0]), gs]
            ws = cw[gs]
            cam_sum += (ws * nll).sum() / ws.sum()
        total += cam_sum / ncam
    return total / b * weight


if __name__ == "__main__":
    key = jax.random.PRNGKey(0)
    B, NCAM, H, W = 2, 2, 16, 16          # render_img_shape = (16, 16)
    H0, W0 = 20, 20                       # original gt / mask resolution
    NVOX = 32                             # tiny pseudo voxel grid

    k1, k2, k3, k4, k5 = jax.random.split(key, 5)
    voxel_feats = jax.random.normal(k1, (B, NVOX, SEM_DIM), jnp.float32)
    opacity = jax.random.uniform(k2, (B, NVOX, 1), jnp.float32)
    # TODO(synk): render_feature_map (CUDA diff-gaussian rasterization) has no
    # Pallas equivalent; rendered semantic maps are synthesized as kernel input.
    rendered_sem_maps = jax.random.normal(
        k3, (B, NCAM, SEM_DIM, H, W), jnp.float32)
    gt_sem = jax.random.randint(k4, (B, NCAM, H0, W0), 0, SEM_DIM
                                ).astype(jnp.float32)
    sem_label_mask = (jax.random.uniform(k5, (B, NCAM, H0, W0)) > 0.3
                      ).astype(jnp.float32)
    sem_label_mask = sem_label_mask.at[..., 0, 0].set(1.0)  # never fully empty

    head = GausSplatingHeadPallas(
        point_cloud_range=[-40.0, -40.0, -1.0, 40.0, 40.0, 5.4],
        voxel_size=0.4, voxel_feature_dim=SEM_DIM, num_classes=NUM_CLASSES,
        render_img_shape=(H, W), balance_cls_weight=True,
        gaussian_sem_weight=1.0)

    cw64 = np.asarray(head.class_weights, np.float64).reshape(-1)

    # f32 logits path (exact parity with the torch module)
    out = head.forward(voxel_feats, opacity, rendered_sem_maps, gt_sem,
                       sem_label_mask)
    loss = jax.block_until_ready(out['render_sem_loss'])
    ref = _ref_forward(np.asarray(rendered_sem_maps), np.asarray(gt_sem),
                       np.asarray(sem_label_mask), cw64, H, W,
                       head.gaussian_sem_weight)
    np.testing.assert_allclose(float(loss), float(ref), rtol=1e-4, atol=1e-5)

    # bf16 logits path (halves the dominant DMA; kernel upcasts to f32)
    rendered_bf16 = rendered_sem_maps.astype(jnp.bfloat16)
    out_bf16 = head.forward(voxel_feats, opacity, rendered_bf16, gt_sem,
                            sem_label_mask)
    loss_bf16 = jax.block_until_ready(out_bf16['render_sem_loss'])
    ref_bf16 = _ref_forward(np.asarray(rendered_bf16.astype(jnp.float32)),
                            np.asarray(gt_sem), np.asarray(sem_label_mask),
                            cw64, H, W, head.gaussian_sem_weight)
    np.testing.assert_allclose(float(loss_bf16), float(ref_bf16),
                               rtol=2e-3, atol=1e-4)

    print("KERNEL_OK")
</pallas_src>

<mosaic_0001>
module attributes {stable_mosaic.version = 11 : i64} {
  func.func @_weighted_ce_kernel(%arg0: i32, %arg1: i32, %arg2: memref<2x17x256xf32, #tpu.memory_space<vmem>>, %arg3: memref<2x1x256xi32, #tpu.memory_space<vmem>>, %arg4: memref<17x1xf32, #tpu.memory_space<vmem>>, %arg5: memref<1x2x128xf32, #tpu.memory_space<vmem>>) attributes {dimension_semantics = [#tpu.dimension_semantics<parallel>, #tpu.dimension_semantics<arbitrary>], iteration_bounds = array<i64: 2, 1>, scalar_prefetch = 0 : i64, scratch_operands = 0 : i64, tpu.core_type = #tpu.core_type<tc>, window_params = [{transform_indices = @transform_0, window_bounds = array<i64: 2, 17, 256>}, {transform_indices = @transform_1, window_bounds = array<i64: 2, 1, 256>}, {pipeline_mode = #tpu.pipeline_mode<synchronous>, transform_indices = @transform_2, window_bounds = array<i64: 17, 1>}, {transform_indices = @transform_3, window_bounds = array<i64: 1, 2, 128>}]} {
    %c0_i32 = arith.constant 0 : i32
    %0 = arith.cmpi eq, %arg1, %c0_i32 : i32
    %1 = arith.extui %0 : i1 to i32
    %c0_i32_0 = arith.constant 0 : i32
    %2 = arith.cmpi ne, %1, %c0_i32_0 : i32
    scf.if %2 {
      %cst_42 = arith.constant 0.000000e+00 : f32
      %114 = vector.broadcast %cst_42 : f32 to vector<2x128xf32>
      %c0_43 = arith.constant 0 : index
      %c0_44 = arith.constant 0 : index
      %c0_45 = arith.constant 0 : index
      %115 = vector.load %arg5[%c0_43, %c0_44, %c0_45] : memref<1x2x128xf32, #tpu.memory_space<vmem>>, vector<1x2x128xf32>
      %116 = vector.shape_cast %115 : vector<1x2x128xf32> to vector<2x128xf32>
      %117 = vector.shape_cast %114 : vector<2x128xf32> to vector<1x2x128xf32>
      tpu.vector_store %arg5[%c0_43, %c0_44, %c0_45], %117 {strides = array<i32>} : memref<1x2x128xf32, #tpu.memory_space<vmem>>, vector<1x2x128xf32>,
    } else {
    }
    %c0 = arith.constant 0 : index
    %c0_1 = arith.constant 0 : index
    %3 = vector.load %arg4[%c0, %c0_1] : memref<17x1xf32, #tpu.memory_space<vmem>>, vector<17x1xf32>
    %4 = tpu.iota {dimensions = array<i32: 0>} : vector<17x256xi32>
    %5 = tpu.iota {dimensions = array<i32: 0>} : vector<2x128xi32>
    %6 = tpu.iota {dimensions = array<i32: 1>} : vector<2x128xi32>
    %cst = arith.constant 0.000000e+00 : f32
    %7 = vector.broadcast %cst : f32 to vector<2x128xf32>
    %c0_2 = arith.constant 0 : index
    %c0_3 = arith.constant 0 : index
    %c0_4 = arith.constant 0 : index
    %8 = vector.load %arg2[%c0_2, %c0_3, %c0_4] : memref<2x17x256xf32, #tpu.memory_space<vmem>>, vector<1x17x256xf32>
    %9 = vector.shape_cast %8 : vector<1x17x256xf32> to vector<17x256xf32>
    %c0_5 = arith.constant 0 : index
    %c0_6 = arith.constant 0 : index
    %c0_7 = arith.constant 0 : index
    %10 = vector.load %arg3[%c0_5, %c0_6, %c0_7] : memref<2x1x256xi32, #tpu.memory_space<vmem>>, vector<1x1x256xi32>
    %11 = vector.shape_cast %10 : vector<1x1x256xi32> to vector<1x256xi32>
    %cst_8 = arith.constant dense<0xFF800000> : vector<256xf32>
    %12 = vector.multi_reduction <maximumf>, %9, %cst_8 [0] : vector<17x256xf32> to vector<256xf32>
    %13 = vector.shape_cast %12 : vector<256xf32> to vector<1x256xf32>
    %14 = vector.broadcast %13 : vector<1x256xf32> to vector<17x256xf32>
    %15 = arith.subf %9, %14 : vector<17x256xf32>
    %16 = math.exp %15 : vector<17x256xf32>
    %cst_9 = arith.constant dense<0.000000e+00> : vector<256xf32>
    %17 = vector.multi_reduction <add>, %16, %cst_9 [0] : vector<17x256xf32> to vector<256xf32>
    %18 = vector.shape_cast %17 : vector<256xf32> to vector<1x256xf32>
    %19 = math.log %18 : vector<1x256xf32>
    %20 = arith.addf %13, %19 : vector<1x256xf32>
    %21 = vector.broadcast %11 : vector<1x256xi32> to vector<17x256xi32>
    %22 = arith.cmpi eq, %21, %4 : vector<17x256xi32>
    %cst_10 = arith.constant 0.000000e+00 : f32
    %23 = vector.shape_cast %3 : vector<17x1xf32> to vector<17x1xf32>
    %24 = vector.broadcast %23 : vector<17x1xf32> to vector<17x256xf32>
    %25 = vector.broadcast %cst_10 : f32 to vector<17x256xf32>
    %26 = arith.select %22, %24, %25 : vector<17x256xi1>, vector<17x256xf32>
    %27 = arith.mulf %26, %9 : vector<17x256xf32>
    %cst_11 = arith.constant dense<0.000000e+00> : vector<256xf32>
    %28 = vector.multi_reduction <add>, %27, %cst_11 [0] : vector<17x256xf32> to vector<256xf32>
    %29 = vector.shape_cast %28 : vector<256xf32> to vector<1x256xf32>
    %cst_12 = arith.constant dense<0.000000e+00> : vector<256xf32>
    %30 = vector.multi_reduction <add>, %26, %cst_12 [0] : vector<17x256xf32> to vector<256xf32>
    %31 = vector.shape_cast %30 : vector<256xf32> to vector<1x256xf32>
    %32 = arith.mulf %20, %31 : vector<1x256xf32>
    %33 = arith.subf %32, %29 : vector<1x256xf32>
    %34 = vector.shape_cast %33 : vector<1x256xf32> to vector<1x1x256xf32>
    %cst_13 = arith.constant dense<0.000000e+00> : vector<1xf32>
    %35 = vector.multi_reduction <add>, %34, %cst_13 [1, 2] : vector<1x1x256xf32> to vector<1xf32>
    %36 = vector.shape_cast %35 : vector<1xf32> to vector<1x1x1xf32>
    %37 = vector.extract %36[0, 0, 0] : f32 from vector<1x1x1xf32>
    %38 = vector.shape_cast %31 : vector<1x256xf32> to vector<1x1x256xf32>
    %cst_14 = arith.constant dense<0.000000e+00> : vector<1xf32>
    %39 = vector.multi_reduction <add>, %38, %cst_14 [1, 2] : vector<1x1x256xf32> to vector<1xf32>
    %40 = vector.shape_cast %39 : vector<1xf32> to vector<1x1x1xf32>
    %41 = vector.extract %40[0, 0, 0] : f32 from vector<1x1x1xf32>
    %c0_i32_15 = arith.constant 0 : i32
    %42 = vector.broadcast %c0_i32_15 : i32 to vector<2x128xi32>
    %43 = arith.cmpi eq, %5, %42 : vector<2x128xi32>
    %c0_i32_16 = arith.constant 0 : i32
    %44 = vector.broadcast %c0_i32_16 : i32 to vector<2x128xi32>
    %45 = arith.cmpi eq, %6, %44 : vector<2x128xi32>
    %46 = arith.andi %43, %45 : vector<2x128xi1>
    %cst_17 = arith.constant 0.000000e+00 : f32
    %47 = vector.broadcast %37 : f32 to vector<2x128xf32>
    %48 = vector.broadcast %cst_17 : f32 to vector<2x128xf32>
    %49 = arith.select %46, %47, %48 : vector<2x128xi1>, vector<2x128xf32>
    %50 = arith.addf %7, %49 : vector<2x128xf32>
    %c1_i32 = arith.constant 1 : i32
    %51 = vector.broadcast %c1_i32 : i32 to vector<2x128xi32>
    %52 = arith.cmpi eq, %6, %51 : vector<2x128xi32>
    %53 = arith.andi %43, %52 : vector<2x128xi1>
    %cst_18 = arith.constant 0.000000e+00 : f32
    %54 = vector.broadcast %41 : f32 to vector<2x128xf32>
    %55 = vector.broadcast %cst_18 : f32 to vector<2x128xf32>
    %56 = arith.select %53, %54, %55 : vector<2x128xi1>, vector<2x128xf32>
    %57 = arith.addf %50, %56 : vector<2x128xf32>
    %c1 = arith.constant 1 : index
    %c0_19 = arith.constant 0 : index
    %c0_20 = arith.constant 0 : index
    %58 = vector.load %arg2[%c1, %c0_19, %c0_20] : memref<2x17x256xf32, #tpu.memory_space<vmem>>, vector<1x17x256xf32>
    %59 = vector.shape_cast %58 : vector<1x17x256xf32> to vector<17x256xf32>
    %c1_21 = arith.constant 1 : index
    %c0_22 = arith.constant 0 : index
    %c0_23 = arith.constant 0 : index
    %60 = vector.load %arg3[%c1_21, %c0_22, %c0_23] : memref<2x1x256xi32, #tpu.memory_space<vmem>>, vector<1x1x256xi32>
    %61 = vector.shape_cast %60 : vector<1x1x256xi32> to vector<1x256xi32>
    %cst_24 = arith.constant dense<0xFF800000> : vector<256xf32>
    %62 = vector.multi_reduction <maximumf>, %59, %cst_24 [0] : vector<17x256xf32> to vector<256xf32>
    %63 = vector.shape_cast %62 : vector<256xf32> to vector<1x256xf32>
    %64 = vector.broadcast %63 : vector<1x256xf32> to vector<17x256xf32>
    %65 = arith.subf %59, %64 : vector<17x256xf32>
    %66 = math.exp %65 : vector<17x256xf32>
    %cst_25 = arith.constant dense<0.000000e+00> : vector<256xf32>
    %67 = vector.multi_reduction <add>, %66, %cst_25 [0] : vector<17x256xf32> to vector<256xf32>
    %68 = vector.shape_cast %67 : vector<256xf32> to vector<1x256xf32>
    %69 = math.log %68 : vector<1x256xf32>
    %70 = arith.addf %63, %69 : vector<1x256xf32>
    %71 = vector.broadcast %61 : vector<1x256xi32> to vector<17x256xi32>
    %72 = arith.cmpi eq, %71, %4 : vector<17x256xi32>
    %cst_26 = arith.constant 0.000000e+00 : f32
    %73 = vector.shape_cast %3 : vector<17x1xf32> to vector<17x1xf32>
    %74 = vector.broadcast %73 : vector<17x1xf32> to vector<17x256xf32>
    %75 = vector.broadcast %cst_26 : f32 to vector<17x256xf32>
    %76 = arith.select %72, %74, %75 : vector<17x256xi1>, vector<17x256xf32>
    %77 = arith.mulf %76, %59 : vector<17x256xf32>
    %cst_27 = arith.constant dense<0.000000e+00> : vector<256xf32>
    %78 = vector.multi_reduction <add>, %77, %cst_27 [0] : vector<17x256xf32> to vector<256xf32>
    %79 = vector.shape_cast %78 : vector<256xf32> to vector<1x256xf32>
    %cst_28 = arith.constant dense<0.000000e+00> : vector<256xf32>
    %80 = vector.multi_reduction <add>, %76, %cst_28 [0] : vector<17x256xf32> to vector<256xf32>
    %81 = vector.shape_cast %80 : vector<256xf32> to vector<1x256xf32>
    %82 = arith.mulf %70, %81 : vector<1x256xf32>
    %83 = arith.subf %82, %79 : vector<1x256xf32>
    %84 = vector.shape_cast %83 : vector<1x256xf32> to vector<1x1x256xf32>
    %cst_29 = arith.constant dense<0.000000e+00> : vector<1xf32>
    %85 = vector.multi_reduction <add>, %84, %cst_29 [1, 2] : vector<1x1x256xf32> to vector<1xf32>
    %86 = vector.shape_cast %85 : vector<1xf32> to vector<1x1x1xf32>
    %87 = vector.extract %86[0, 0, 0] : f32 from vector<1x1x1xf32>
    %88 = vector.shape_cast %81 : vector<1x256xf32> to vector<1x1x256xf32>
    %cst_30 = arith.constant dense<0.000000e+00> : vector<1xf32>
    %89 = vector.multi_reduction <add>, %88, %cst_30 [1, 2] : vector<1x1x256xf32> to vector<1xf32>
    %90 = vector.shape_cast %89 : vector<1xf32> to vector<1x1x1xf32>
    %91 = vector.extract %90[0, 0, 0] : f32 from vector<1x1x1xf32>
    %c1_i32_31 = arith.constant 1 : i32
    %92 = vector.broadcast %c1_i32_31 : i32 to vector<2x128xi32>
    %93 = arith.cmpi eq, %5, %92 : vector<2x128xi32>
    %c0_i32_32 = arith.constant 0 : i32
    %94 = vector.broadcast %c0_i32_32 : i32 to vector<2x128xi32>
    %95 = arith.cmpi eq, %6, %94 : vector<2x128xi32>
    %96 = arith.andi %93, %95 : vector<2x128xi1>
    %cst_33 = arith.constant 0.000000e+00 : f32
    %97 = vector.broadcast %87 : f32 to vector<2x128xf32>
    %98 = vector.broadcast %cst_33 : f32 to vector<2x128xf32>
    %99 = arith.select %96, %97, %98 : vector<2x128xi1>, vector<2x128xf32>
    %100 = arith.addf %57, %99 : vector<2x128xf32>
    %c1_i32_34 = arith.constant 1 : i32
    %101 = vector.broadcast %c1_i32_34 : i32 to vector<2x128xi32>
    %102 = arith.cmpi eq, %6, %101 : vector<2x128xi32>
    %103 = arith.andi %93, %102 : vector<2x128xi1>
    %cst_35 = arith.constant 0.000000e+00 : f32
    %104 = vector.broadcast %91 : f32 to vector<2x128xf32>
    %105 = vector.broadcast %cst_35 : f32 to vector<2x128xf32>
    %106 = arith.select %103, %104, %105 : vector<2x128xi1>, vector<2x128xf32>
    %107 = arith.addf %100, %106 : vector<2x128xf32>
    %c0_36 = arith.constant 0 : index
    %c0_37 = arith.constant 0 : index
    %c0_38 = arith.constant 0 : index
    %108 = vector.load %arg5[%c0_36, %c0_37, %c0_38] : memref<1x2x128xf32, #tpu.memory_space<vmem>>, vector<1x2x128xf32>
    %109 = vector.shape_cast %108 : vector<1x2x128xf32> to vector<2x128xf32>
    %110 = arith.addf %109, %107 : vector<2x128xf32>
    %c0_39 = arith.constant 0 : index
    %c0_40 = arith.constant 0 : index
    %c0_41 = arith.constant 0 : index
    %111 = vector.load %arg5[%c0_39, %c0_40, %c0_41] : memref<1x2x128xf32, #tpu.memory_space<vmem>>, vector<1x2x128xf32>
    %112 = vector.shape_cast %111 : vector<1x2x128xf32> to vector<2x128xf32>
    %113 = vector.shape_cast %110 : vector<2x128xf32> to vector<1x2x128xf32>
    tpu.vector_store %arg5[%c0_39, %c0_40, %c0_41], %113 {strides = array<i32>} : memref<1x2x128xf32, #tpu.memory_space<vmem>>, vector<1x2x128xf32>,
    return
  }
  func.func @transform_0(%arg0: i32, %arg1: i32) -> (i32, i32, i32) {
    %c0_i32 = arith.constant 0 : i32
    %c0_i32_0 = arith.constant 0 : i32
    return %arg0, %c0_i32, %arg1 : i32, i32, i32
  }
  func.func @transform_1(%arg0: i32, %arg1: i32) -> (i32, i32, i32) {
    %c0_i32 = arith.constant 0 : i32
    %c0_i32_0 = arith.constant 0 : i32
    return %arg0, %c0_i32, %arg1 : i32, i32, i32
  }
  func.func @transform_2(%arg0: i32, %arg1: i32) -> (i32, i32) {
    %c0_i32 = arith.constant 0 : i32
    %c0_i32_0 = arith.constant 0 : i32
    %c0_i32_1 = arith.constant 0 : i32
    return %c0_i32, %c0_i32_0 : i32, i32
  }
  func.func @transform_3(%arg0: i32, %arg1: i32) -> (i32, i32, i32) {
    %c0_i32 = arith.constant 0 : i32
    %c0_i32_0 = arith.constant 0 : i32
    %c0_i32_1 = arith.constant 0 : i32
    return %arg0, %c0_i32, %c0_i32_0 : i32, i32, i32
  }
}

</mosaic_0001>

<llo_original>
// kernel: tpu_custom_call.1
$region0: #{tpu_custom_call.1}
  #allocation0 [shape = 'u32[]', space=smem, size = 0x4, offset = 0x4, fixed_abs, tag = 'smem constant byte address 0x4 - core index']
  #allocation1 [shape = 'u32[72,128]{1,0:T(1,128)}', space=vmem, size = 0x9000, scoped, tag = 'internal scratch']
  %s0 = inlined_call_operand.vmem [shape: f32[4,17,256], index: 0, kind: input, shape index: {}]
  %s1 = inlined_call_operand.vmem [shape: s32[4,1,256], index: 1, kind: input, shape index: {}]
  %s2 = inlined_call_operand.vmem [shape: f32[17,1], index: 2, kind: input, shape index: {}]
  %s3 = inlined_call_operand.hbm [shape: f32[2,2,128], index: 3, kind: output, shape index: {}]
  %s4 = sld [smem:[#allocation0]]
  $region49: #{tpu_custom_call.1} parent=0
    _
  %s6 = ssub.s32 1, %s4
  %s7 = scalar_select 0, %s6, %s4
  $region1: #{tpu_custom_call.1} parent=0
    #allocation2 [shape = 'u8[2048]{0}', space=vmem, size = 0x800, scoped, tag = 'output window, operand 0']
    #allocation3 [shape = 's32[2]{0}', space=sflag, size = 0x8, scoped, tag = 'scoped memory for tpu_custom_call.1']
    %8 = vsyncpa [#allocation3], 0
    %s9 = scalar_lea.sflag [#allocation3], 1
    %10 = vsyncpa %s9, 0
    loop: start=0, step=1, limit=4
    $region2: #{tpu_custom_call.1} parent=1 // loop_pre_header
      _
    $region3: #{tpu_custom_call.1} parent=1 // loop_header
      %s12 = sphi 0, %s16
      %p13 = scmp.ge.s32.totalorder %s12, 4
      %s19 = sphi 0, %s31
      %s20 = sphi 0, %s27
      %s21 = sphi 0, %s19
      %s22 = sphi 0, %s20
      %s23 = sphi 0, %s21
      %s24 = sphi 0, %s22
      %s36 = sphi 0, %s38
      %s39 = sphi 0, %s36
      %s40 = sphi 0, %s39
      %s56 = sphi 0, %s40
      %s64 = sphi 0, %s66
      %s67 = sphi 0, %s64
      %s68 = sphi 0, %s67
      %s84 = sphi 0, %s68
      %s88 = sphi 0, %s88
      %s90 = sphi 0, %s88
      %s91 = sphi 0, %s90
      %s105 = sphi 0, %s91
      %s111 = sphi 0, %s113
      %s114 = sphi 0, %s111
      %s115 = sphi 0, %s114
      %s131 = sphi 0, %s115
    $region4: #{tpu_custom_call.1} parent=1 // loop_header_branch
      %15 = sbr.rel (%p13) target = $region8
    $region5: #{tpu_custom_call.1} parent=1 // loop_body
      %s17 = ssub.s32 %s12, 1
      %s18 = ssub.s32 %s12, 2
      %s25 = sadd.s32 1, %s20
      %p26 = scmp.ge.s32.totalorder %s25, 1
      %s27 = scalar_select %p26, 0, %s25
      %s28 = sadd.s32 1, %s19
      %s29 = scalar_select %p26, %s28, %s19
      %p30 = scmp.ge.s32.totalorder %s29, 2
      %s31 = scalar_select %p30, 0, %s29
      %s32 = ssub.s32 %s19, %s31
      %s33 = ssub.s32 %s20, %s27
      %s34 = sor.u32 %s32, %s33
      %p35 = scmp.eq.s32.totalorder %s34, 0
      %s37 = sadd.s32 %s36, 1
      %s38 = scalar_select %p35, %s36, %s37
      %p41 = pneg %p35
      %p42 = scmp.eq.s32.totalorder %s12, 1
      %p43 = por %p41, %p42
      %p44 = scmp.ne.s32.totalorder %s36, %s39
      %p45 = scmp.eq.s32.totalorder %s12, 0
      %p46 = por %p44, %p45
      %p47 = scmp.ne.s32.totalorder %s36, %s39
      %p48 = scmp.eq.s32.totalorder %s17, 1
      %p49 = por %p47, %p48
      %p50 = scmp.ne.s32.totalorder %s39, %s40
      %p51 = scmp.eq.s32.totalorder %s17, 0
      %p52 = por %p50, %p51
      %p53 = scmp.ne.s32.totalorder %s39, %s40
      %p54 = scmp.eq.s32.totalorder %s18, 1
      %p55 = por %p53, %p54
      %p57 = scmp.ne.s32.totalorder %s40, %s56
      %p58 = scmp.eq.s32.totalorder %s18, 0
      %p59 = por %p57, %p58
      %s60 = ssub.s32 %s19, %s31
      %s61 = ssub.s32 %s20, %s27
      %s62 = sor.u32 %s60, %s61
      %p63 = scmp.eq.s32.totalorder %s62, 0
      %s65 = sadd.s32 %s64, 1
      %s66 = scalar_select %p63, %s64, %s65
      %p69 = pneg %p63
      %p70 = scmp.eq.s32.totalorder %s12, 1
      %p71 = por %p69, %p70
      %p72 = scmp.ne.s32.totalorder %s64, %s67
      %p73 = scmp.eq.s32.totalorder %s12, 0
      %p74 = por %p72, %p73
      %p75 = scmp.ne.s32.totalorder %s64, %s67
      %p76 = scmp.eq.s32.totalorder %s17, 1
      %p77 = por %p75, %p76
      %p78 = scmp.ne.s32.totalorder %s67, %s68
      %p79 = scmp.eq.s32.totalorder %s17, 0
      %p80 = por %p78, %p79
      %p81 = scmp.ne.s32.totalorder %s67, %s68
      %p82 = scmp.eq.s32.totalorder %s18, 1
      %p83 = por %p81, %p82
      %p85 = scmp.ne.s32.totalorder %s68, %s84
      %p86 = scmp.eq.s32.totalorder %s18, 0
      %p87 = por %p85, %p86
      %s89 = sadd.s32 %s88, 1
      %p92 = scmp.eq.s32.totalorder %s12, 1
      %p93 = scmp.ne.s32.totalorder %s88, %s90
      %p94 = scmp.eq.s32.totalorder %s12, 0
      %p95 = por %p93, %p94
      %p96 = scmp.ne.s32.totalorder %s88, %s90
      %p97 = scmp.eq.s32.totalorder %s17, 1
      %p98 = por %p96, %p97
      %p99 = scmp.ne.s32.totalorder %s90, %s91
      %p100 = scmp.eq.s32.totalorder %s17, 0
      %p101 = por %p99, %p100
      %p102 = scmp.ne.s32.totalorder %s90, %s91
      %p103 = scmp.eq.s32.totalorder %s18, 1
      %p104 = por %p102, %p103
      %p106 = scmp.ne.s32.totalorder %s91, %s105
      %p107 = scmp.eq.s32.totalorder %s18, 0
      %p108 = por %p106, %p107
      %s109 = ssub.s32 %s19, %s31
      %p110 = scmp.eq.s32.totalorder %s109, 0
      %s112 = sadd.s32 %s111, 1
      %s113 = scalar_select %p110, %s111, %s112
      %p116 = pneg %p110
      %p117 = scmp.eq.s32.totalorder %s12, 1
      %p118 = por %p116, %p117
      %p119 = scmp.ne.s32.totalorder %s111, %s114
      %p120 = scmp.eq.s32.totalorder %s12, 0
      %p121 = por %p119, %p120
      %p122 = scmp.ne.s32.totalorder %s111, %s114
      %p123 = scmp.eq.s32.totalorder %s17, 1
      %p124 = por %p122, %p123
      %p125 = scmp.ne.s32.totalorder %s114, %s115
      %p126 = scmp.eq.s32.totalorder %s17, 0
      %p127 = por %p125, %p126
      %p128 = scmp.ne.s32.totalorder %s114, %s115
      %p129 = scmp.eq.s32.totalorder %s18, 1
      %p130 = por %p128, %p129
      %p132 = scmp.ne.s32.totalorder %s115, %s131
      %p133 = scmp.eq.s32.totalorder %s18, 0
      %p134 = por %p132, %p133
      %p135 = scmp.le.s32.totalorder 1, %s12
      %p136 = scmp.lt.s32.totalorder %s12, 3
      %p137 = pnand %p135, %p136
      %p138 = pneg %p137
      // Predicated region
      $region9: #{tpu_custom_call.1} parent=5 // pred_check
        _
      $region10: #{tpu_custom_call.1} parent=5 // pred_check_branch
        %140 = sbr.rel (%p137) target = $region12
      $region11: #{tpu_custom_call.1} parent=5 // pred_region
        %s141 = ssub.s32 %s12, 1
        // Predicated region
        $region13: #{tpu_custom_call.1} parent=11 // pred_check
          %p142 = pneg %p101
        $region14: #{tpu_custom_call.1} parent=11 // pred_check_branch
          %144 = sbr.rel (%p142) target = $region16
        $region15: #{tpu_custom_call.1} parent=11 // pred_region
          _
        $region16: #{tpu_custom_call.1} parent=11 // pred_fallthru
          _
      $region12: #{tpu_custom_call.1} parent=5 // pred_fallthru
        _
      %p145 = scmp.lt.s32.totalorder %s12, 2
      // Predicated region
      $region17: #{tpu_custom_call.1} parent=5 // pred_check
        %p146 = pneg %p145
      $region18: #{tpu_custom_call.1} parent=5 // pred_check_branch
        %148 = sbr.rel (%p146) target = $region20
      $region19: #{tpu_custom_call.1} parent=5 // pred_region
        // Predicated region
        $region21: #{tpu_custom_call.1} parent=19 // pred_check
          %p149 = pneg %p46
        $region22: #{tpu_custom_call.1} parent=19 // pred_check_branch
          %151 = sbr.rel (%p149) target = $region24
        $region23: #{tpu_custom_call.1} parent=19 // pred_region
          %s152 = smul.u32 2, %s19
          %s153 = smul.u32 2, %s20
          %p154 = scmp.lt.s32.totalorder %s152, 3
          %s155 = scalar_select %p154, %s152, 3
          %p156 = scmp.lt.s32.totalorder %s153, 1
          %s157 = scalar_select %p156, %s153, 1
          %s158 = smul.addr %s155, 6
          %s159 = sadd.s32 %s157, %s158
          %s160 = smul.addr %s159, 8
          %s161 = scalar_lea.vmem %s0, %s160
          %s162 = smul.u32 2, %s19
          %s163 = smul.u32 2, %s20
        $region24: #{tpu_custom_call.1} parent=19 // pred_fallthru
          _
        // Predicated region
        $region25: #{tpu_custom_call.1} parent=19 // pred_check
          %p164 = pneg %p74
        $region26: #{tpu_custom_call.1} parent=19 // pred_check_branch
          %166 = sbr.rel (%p164) target = $region28
        $region27: #{tpu_custom_call.1} parent=19 // pred_region
          %s167 = smul.u32 2, %s19
          %s168 = smul.u32 2, %s20
          %p169 = scmp.lt.s32.totalorder %s167, 3
          %s170 = scalar_select %p169, %s167, 3
          %p171 = scmp.lt.s32.totalorder %s168, 1
          %s172 = scalar_select %p171, %s168, 1
          %s173 = smul.addr %s170, 2
          %s174 = sadd.s32 %s172, %s173
          %s175 = scalar_lea.vmem %s1, %s174
          %s176 = smul.u32 2, %s19
          %s177 = smul.u32 2, %s20
        $region28: #{tpu_custom_call.1} parent=19 // pred_fallthru
          _
      $region20: #{tpu_custom_call.1} parent=5 // pred_fallthru
        _
      %p178 = scmp.le.s32.totalorder 1, %s12
      %p179 = scmp.lt.s32.totalorder %s12, 3
      %p180 = pnand %p178, %p179
      %p181 = pneg %p180
      // Predicated region
      $region29: #{tpu_custom_call.1} parent=5 // pred_check
        _
      $region30: #{tpu_custom_call.1} parent=5 // pred_check_branch
        %183 = sbr.rel (%p180) target = $region32
      $region31: #{tpu_custom_call.1} parent=5 // pred_region
        %s184 = ssub.s32 %s12, 1
        %s185 = smul.u32 2, %s21
        %s186 = smul.u32 2, %s22
        %p187 = scmp.lt.s32.totalorder %s185, 3
        %s188 = scalar_select %p187, %s185, 3
        %p189 = scmp.lt.s32.totalorder %s186, 1
        %s190 = scalar_select %p189, %s186, 1
        %s191 = smul.addr %s188, 6
        %s192 = sadd.s32 %s190, %s191
        %s193 = smul.addr %s192, 8
        %s194 = scalar_lea.vmem %s0, %s193
        %p195 = pneg %p52
        %p196 = pneg %p49
        %s197 = smul.u32 2, %s21
        %s198 = smul.u32 2, %s22
        %p199 = scmp.lt.s32.totalorder %s197, 3
        %s200 = scalar_select %p199, %s197, 3
        %p201 = scmp.lt.s32.totalorder %s198, 1
        %s202 = scalar_select %p201, %s198, 1
        %s203 = smul.addr %s200, 2
        %s204 = sadd.s32 %s202, %s203
        %s205 = scalar_lea.vmem %s1, %s204
        %p206 = pneg %p80
        %p207 = pneg %p77
        %p208 = pneg %p101
        %p209 = pneg %p98
        %p210 = pneg %p127
        %p211 = pneg %p124
        %s212 = sand.u32 %s114, 1
        %s213 = scalar_lea.sflag [#allocation3], %s212
        %s214 = sand.u32 %s114, 1
        %s215 = smul.addr %s214, 2
        %s216 = scalar_lea.vmem [#allocation2], %s215
        %s217 = smul.u32 2, %s21
        %s218 = smul.u32 2, %s22
        %p219 = scmp.lt.s32.totalorder %s217, 3
        %s220 = scalar_select %p219, %s217, 3
        %p221 = scmp.lt.s32.totalorder %s218, 1
        %s222 = scalar_select %p221, %s218, 1
        %s223 = smul.addr %s220, 6
        %s224 = sadd.s32 %s222, %s223
        %s225 = smul.addr %s224, 8
        %s226 = scalar_lea.vmem %s0, %s225
        %s227 = smul.u32 2, %s21
        %s228 = smul.u32 2, %s22
        %s229 = smul.u32 2, %s21
        %s230 = smul.u32 2, %s22
        %p231 = scmp.lt.s32.totalorder %s229, 3
        %s232 = scalar_select %p231, %s229, 3
        %p233 = scmp.lt.s32.totalorder %s230, 1
        %s234 = scalar_select %p233, %s230, 1
        %s235 = smul.addr %s232, 2
        %s236 = sadd.s32 %s234, %s235
        %s237 = scalar_lea.vmem %s1, %s236
        %s238 = smul.u32 2, %s21
        %s239 = smul.u32 2, %s22
        %p240 = scmp.eq.s32.totalorder %s22, 0
        // Predicated region
        $region33: #{tpu_custom_call.1} parent=31 // pred_check
          %p241 = pneg %p240
        $region34: #{tpu_custom_call.1} parent=31 // pred_check_branch
          %243 = sbr.rel (%p241) target = $region36
        $region35: #{tpu_custom_call.1} parent=31 // pred_region
          %244 = vst [vmem:[%s216] sm:$0x3] 0.0
        $region36: #{tpu_custom_call.1} parent=31 // pred_fallthru
          _
        %v245 = vld [vmem:[%s2] sm:$0xff]
        %v246 = vld [vmem:[%s2 + $0x8] sm:$0xff]
        %v247 = vld [vmem:[%s2 + $0x10] sm:$0x1]
        %v248 = vlaneseq
        %v249 = vshrl.u32 %v248, 7
        %v250 = vadd.s32 %v249, 8
        %v251 = vadd.s32 %v249, 16
        %v252 = vlaneseq
        %v253 = vand.u32 %v252, 127
        %v254 = vld [vmem:[%s226] sm:$0xff]
        %v255 = vld [vmem:[%s226 + $0x8] sm:$0xff]
        %v256 = vld [vmem:[%s226 + $0x10] sm:$0xff]
        %v257 = vld [vmem:[%s226 + $0x18] sm:$0xff]
        %v258 = vld [vmem:[%s226 + $0x20] sm:$0x1]
        %v259 = vld [vmem:[%s226 + $0x28] sm:$0x1]
        %v260 = vld [vmem:[%s237] sm:$0x3]
        %vm261 = vcmask 1040384
        %v262 = vsel %vm261, %v258, -inf
        %v263 = vmax.f32 %v254, %v262
        %v264 = vmax.f32 %v263, %v256
        %v265 = vrot.slane %v264, 4
        %v266 = vmax.f32 %v264, %v265
        %v267 = vrot.slane %v266, 2
        %v268 = vmax.f32 %v266, %v267
        %v269 = vrot.slane %v268, 1
        %v270 = vmax.f32 %v268, %v269
        %v271 = vsel %vm261, %v259, -inf
        %v272 = vmax.f32 %v255, %v271
        %v273 = vmax.f32 %v272, %v257
        %v274 = vrot.slane %v273, 4
        %v275 = vmax.f32 %v273, %v274
        %v276 = vrot.slane %v275, 2
        %v277 = vmax.f32 %v275, %v276
        %v278 = vrot.slane %v277, 1
        %v279 = vmax.f32 %v277, %v278
        %v280 = vsub.f32 %v254, %v270
        %v281 = vsub.f32 %v255, %v279
        %v282 = vsub.f32 %v256, %v270
        %v283 = vsub.f32 %v257, %v279
        %v284 = vsub.f32 %v258, %v270
        %v285 = vsub.f32 %v259, %v279
        %v286 = vmul.f32 %v280, 1.442695
        %v287 = vpow.pop %v286
        %v288 = vmul.f32 %v281, 1.442695
        %v289 = vpow.pop %v288
        %v290 = vmul.f32 %v282, 1.442695
        %v291 = vpow.pop %v290
        %v292 = vmul.f32 %v283, 1.442695
        %v293 = vpow.pop %v292
        %v294 = vmul.f32 %v284, 1.442695
        %v295 = vpow.pop %v294
        %v296 = vmul.f32 %v285, 1.442695
        %v297 = vpow.pop %v296
        %v298 = vadd.f32 %v287, %v291
        %v299 = vsel %vm261, %v295, 0.0
        %v300 = vadd.f32 %v298, %v299
        %v301 = vrot.slane %v300, 4
        %v302 = vadd.f32 %v300, %v301
        %v303 = vrot.slane %v302, 2
        %v304 = vadd.f32 %v302, %v303
        %v305 = vrot.slane %v304, 1
        %v306 = vadd.f32 %v304, %v305
        %v307 = vadd.f32 %v289, %v293
        %v308 = vsel %vm261, %v297, 0.0
        %v309 = vadd.f32 %v307, %v308
        %v310 = vrot.slane %v309, 4
        %v311 = vadd.f32 %v309, %v310
        %v312 = vrot.slane %v311, 2
        %v313 = vadd.f32 %v311, %v312
        %v314 = vrot.slane %v313, 1
        %v315 = vadd.f32 %v313, %v314
        %v316 = vlog2.pop %v306
        %v317 = vmul.f32 %v316, 0.6931472
        %v318 = vlog2.pop %v315
        %v319 = vmul.f32 %v318, 0.6931472
        %v320 = vadd.f32 %v270, %v317
        %v321 = vadd.f32 %v279, %v319
        %v322 = vperm.slane %v260, 0
        %v323 = vperm.slane %v260, 1
        %vm324 = vcmp.eq.s32.totalorder %v322, %v249
        %vm325 = vcmp.eq.s32.totalorder %v323, %v249
        %vm326 = vcmp.eq.s32.totalorder %v322, %v250
        %vm327 = vcmp.eq.s32.totalorder %v323, %v250
        %vm328 = vcmp.eq.s32.totalorder %v322, %v251
        %vm329 = vcmp.eq.s32.totalorder %v323, %v251
        %331 = vset.pattern.permute.xlu0 0
        %332 = vperm.xlu0 %331, %v245
        %v333 = vpop.permute.xlu0 %332
        %336 = vset.pattern.permute.xlu0 0
        %337 = vperm.xlu0 %336, %v246
        %v338 = vpop.permute.xlu0 %337
        %341 = vset.pattern.permute.xlu0 0
        %342 = vperm.xlu0 %341, %v247
        %v343 = vpop.permute.xlu0 %342
        %v345 = vsel %vm324, %v333, 0.0
        %v346 = vsel %vm325, %v333, 0.0
        %v347 = vsel %vm326, %v338, 0.0
        %v348 = vsel %vm327, %v338, 0.0
        %v349 = vsel %vm328, %v343, 0.0
        %v350 = vsel %vm329, %v343, 0.0
        %v351 = vmul.f32 %v345, %v254
        %v352 = vmul.f32 %v346, %v255
        %v353 = vmul.f32 %v347, %v256
        %v354 = vmul.f32 %v348, %v257
        %v355 = vmul.f32 %v349, %v258
        %v356 = vmul.f32 %v350, %v259
        %v357 = vadd.f32 %v351, %v353
        %v358 = vsel %vm261, %v355, 0.0
        %v359 = vadd.f32 %v357, %v358
        %v360 = vrot.slane %v359, 4
        %v361 = vadd.f32 %v359, %v360
        %v362 = vrot.slane %v361, 2
        %v363 = vadd.f32 %v361, %v362
        %v364 = vrot.slane %v363, 1
        %v365 = vadd.f32 %v363, %v364
        %v366 = vadd.f32 %v352, %v354
        %v367 = vsel %vm261, %v356, 0.0
        %v368 = vadd.f32 %v366, %v367
        %v369 = vrot.slane %v368, 4
        %v370 = vadd.f32 %v368, %v369
        %v371 = vrot.slane %v370, 2
        %v372 = vadd.f32 %v370, %v371
        %v373 = vrot.slane %v372, 1
        %v374 = vadd.f32 %v372, %v373
        %v375 = vadd.f32 %v345, %v347
        %v376 = vsel %vm261, %v349, 0.0
        %v377 = vadd.f32 %v375, %v376
        %v378 = vrot.slane %v377, 4
        %v379 = vadd.f32 %v377, %v378
        %v380 = vrot.slane %v379, 2
        %v381 = vadd.f32 %v379, %v380
        %v382 = vrot.slane %v381, 1
        %v383 = vadd.f32 %v381, %v382
        %v384 = vadd.f32 %v346, %v348
        %v385 = vsel %vm261, %v350, 0.0
        %v386 = vadd.f32 %v384, %v385
        %v387 = vrot.slane %v386, 4
        %v388 = vadd.f32 %v386, %v387
        %v389 = vrot.slane %v388, 2
        %v390 = vadd.f32 %v388, %v389
        %v391 = vrot.slane %v390, 1
        %v392 = vadd.f32 %v390, %v391
        %v393 = vmul.f32 %v320, %v383
        %v394 = vmul.f32 %v321, %v392
        %v395 = vsub.f32 %v393, %v365
        %v396 = vsub.f32 %v394, %v374
        %v397 = vsel %vm261, %v395, 0.0
        %v398 = vsel %vm261, %v396, 0.0
        %v399 = vadd.f32 %v397, %v398
        %400 = vadd.xlane.f32.xlu0 %v399
        %v401 = vpop.xlane.xlu0 %400
        %v402 = vrot.slane %v401, 4
        %v403 = vadd.f32 %v401, %v402
        %v404 = vrot.slane %v403, 2
        %v405 = vadd.f32 %v403, %v404
        %v406 = vrot.slane %v405, 1
        %v407 = vadd.f32 %v405, %v406
        %s408 = vtos %v407
        %v409 = vsel %vm261, %v383, 0.0
        %v410 = vsel %vm261, %v392, 0.0
        %v411 = vadd.f32 %v409, %v410
        %412 = vadd.xlane.f32.xlu0 %v411
        %v413 = vpop.xlane.xlu0 %412
        %v414 = vrot.slane %v413, 4
        %v415 = vadd.f32 %v413, %v414
        %v416 = vrot.slane %v415, 2
        %v417 = vadd.f32 %v415, %v416
        %v418 = vrot.slane %v417, 1
        %v419 = vadd.f32 %v417, %v418
        %s420 = vtos %v419
        %vm421 = vcmp.eq.s32.totalorder %v249, 0
        %vm422 = vcmp.eq.s32.totalorder %v253, 0
        %vm423 = vmand %vm421, %vm422
        %v424 = vstv %s408
        %v425 = vsel %vm423, %v424, 0.0
        %v426 = vadd.f32 %v425, 0.0
        %vm427 = vcmp.eq.s32.totalorder %v253, 1
        %vm428 = vmand %vm421, %vm427
        %v429 = vstv %s420
        %v430 = vsel %vm428, %v429, 0.0
        %v431 = vadd.f32 %v426, %v430
        %s432 = scalar_lea.vmem %s226, 48
        %v433 = vld [vmem:[%s432] sm:$0xff]
        %v434 = vld [vmem:[%s432 + $0x8] sm:$0xff]
        %v435 = vld [vmem:[%s432 + $0x10] sm:$0xff]
        %v436 = vld [vmem:[%s432 + $0x18] sm:$0xff]
        %v437 = vld [vmem:[%s432 + $0x20] sm:$0x1]
        %v438 = vld [vmem:[%s432 + $0x28] sm:$0x1]
        %s439 = scalar_lea.vmem %s237, 2
        %v440 = vld [vmem:[%s439] sm:$0x3]
        %v441 = vsel %vm261, %v437, -inf
        %v442 = vmax.f32 %v433, %v441
        %v443 = vmax.f32 %v442, %v435
        %v444 = vrot.slane %v443, 4
        %v445 = vmax.f32 %v443, %v444
        %v446 = vrot.slane %v445, 2
        %v447 = vmax.f32 %v445, %v446
        %v448 = vrot.slane %v447, 1
        %v449 = vmax.f32 %v447, %v448
        %v450 = vsel %vm261, %v438, -inf
        %v451 = vmax.f32 %v434, %v450
        %v452 = vmax.f32 %v451, %v436
        %v453 = vrot.slane %v452, 4
        %v454 = vmax.f32 %v452, %v453
        %v455 = vrot.slane %v454, 2
        %v456 = vmax.f32 %v454, %v455
        %v457 = vrot.slane %v456, 1
        %v458 = vmax.f32 %v456, %v457
        %v459 = vsub.f32 %v433, %v449
        %v460 = vsub.f32 %v434, %v458
        %v461 = vsub.f32 %v435, %v449
        %v462 = vsub.f32 %v436, %v458
        %v463 = vsub.f32 %v437, %v449
        %v464 = vsub.f32 %v438, %v458
        %v465 = vmul.f32 %v459, 1.442695
        %v466 = vpow.pop %v465
        %v467 = vmul.f32 %v460, 1.442695
        %v468 = vpow.pop %v467
        %v469 = vmul.f32 %v461, 1.442695
        %v470 = vpow.pop %v469
        %v471 = vmul.f32 %v462, 1.442695
        %v472 = vpow.pop %v471
        %v473 = vmul.f32 %v463, 1.442695
        %v474 = vpow.pop %v473
        %v475 = vmul.f32 %v464, 1.442695
        %v476 = vpow.pop %v475
        %v477 = vadd.f32 %v466, %v470
        %v478 = vsel %vm261, %v474, 0.0
        %v479 = vadd.f32 %v477, %v478
        %v480 = vrot.slane %v479, 4
        %v481 = vadd.f32 %v479, %v480
        %v482 = vrot.slane %v481, 2
        %v483 = vadd.f32 %v481, %v482
        %v484 = vrot.slane %v483, 1
        %v485 = vadd.f32 %v483, %v484
        %v486 = vadd.f32 %v468, %v472
        %v487 = vsel %vm261, %v476, 0.0
        %v488 = vadd.f32 %v486, %v487
        %v489 = vrot.slane %v488, 4
        %v490 = vadd.f32 %v488, %v489
        %v491 = vrot.slane %v490, 2
        %v492 = vadd.f32 %v490, %v491
        %v493 = vrot.slane %v492, 1
        %v494 = vadd.f32 %v492, %v493
        %v495 = vlog2.pop %v485
        %v496 = vmul.f32 %v495, 0.6931472
        %v497 = vlog2.pop %v494
        %v498 = vmul.f32 %v497, 0.6931472
        %v499 = vadd.f32 %v449, %v496
        %v500 = vadd.f32 %v458, %v498
        %v501 = vperm.slane %v440, 0
        %v502 = vperm.slane %v440, 1
        %vm503 = vcmp.eq.s32.totalorder %v501, %v249
        %vm504 = vcmp.eq.s32.totalorder %v502, %v249
        %vm505 = vcmp.eq.s32.totalorder %v501, %v250
        %vm506 = vcmp.eq.s32.totalorder %v502, %v250
        %vm507 = vcmp.eq.s32.totalorder %v501, %v251
        %vm508 = vcmp.eq.s32.totalorder %v502, %v251
        %v509 = vsel %vm503, %v333, 0.0
        %v510 = vsel %vm504, %v333, 0.0
        %v511 = vsel %vm505, %v338, 0.0
        %v512 = vsel %vm506, %v338, 0.0
        %v513 = vsel %vm507, %v343, 0.0
        %v514 = vsel %vm508, %v343, 0.0
        %v515 = vmul.f32 %v509, %v433
        %v516 = vmul.f32 %v510, %v434
        %v517 = vmul.f32 %v511, %v435
        %v518 = vmul.f32 %v512, %v436
        %v519 = vmul.f32 %v513, %v437
        %v520 = vmul.f32 %v514, %v438
        %v521 = vadd.f32 %v515, %v517
        %v522 = vsel %vm261, %v519, 0.0
        %v523 = vadd.f32 %v521, %v522
        %v524 = vrot.slane %v523, 4
        %v525 = vadd.f32 %v523, %v524
        %v526 = vrot.slane %v525, 2
        %v527 = vadd.f32 %v525, %v526
        %v528 = vrot.slane %v527, 1
        %v529 = vadd.f32 %v527, %v528
        %v530 = vadd.f32 %v516, %v518
        %v531 = vsel %vm261, %v520, 0.0
        %v532 = vadd.f32 %v530, %v531
        %v533 = vrot.slane %v532, 4
        %v534 = vadd.f32 %v532, %v533
        %v535 = vrot.slane %v534, 2
        %v536 = vadd.f32 %v534, %v535
        %v537 = vrot.slane %v536, 1
        %v538 = vadd.f32 %v536, %v537
        %v539 = vadd.f32 %v509, %v511
        %v540 = vsel %vm261, %v513, 0.0
        %v541 = vadd.f32 %v539, %v540
        %v542 = vrot.slane %v541, 4
        %v543 = vadd.f32 %v541, %v542
        %v544 = vrot.slane %v543, 2
        %v545 = vadd.f32 %v543, %v544
        %v546 = vrot.slane %v545, 1
        %v547 = vadd.f32 %v545, %v546
        %v548 = vadd.f32 %v510, %v512
        %v549 = vsel %vm261, %v514, 0.0
        %v550 = vadd.f32 %v548, %v549
        %v551 = vrot.slane %v550, 4
        %v552 = vadd.f32 %v550, %v551
        %v553 = vrot.slane %v552, 2
        %v554 = vadd.f32 %v552, %v553
        %v555 = vrot.slane %v554, 1
        %v556 = vadd.f32 %v554, %v555
        %v557 = vmul.f32 %v499, %v547
        %v558 = vmul.f32 %v500, %v556
        %v559 = vsub.f32 %v557, %v529
        %v560 = vsub.f32 %v558, %v538
        %v561 = vsel %vm261, %v559, 0.0
        %v562 = vsel %vm261, %v560, 0.0
        %v563 = vadd.f32 %v561, %v562
        %564 = vadd.xlane.f32.xlu0 %v563
        %v565 = vpop.xlane.xlu0 %564
        %v566 = vrot.slane %v565, 4
        %v567 = vadd.f32 %v565, %v566
        %v568 = vrot.slane %v567, 2
        %v569 = vadd.f32 %v567, %v568
        %v570 = vrot.slane %v569, 1
        %v571 = vadd.f32 %v569, %v570
        %s572 = vtos %v571
        %v573 = vsel %vm261, %v547, 0.0
        %v574 = vsel %vm261, %v556, 0.0
        %v575 = vadd.f32 %v573, %v574
        %576 = vadd.xlane.f32.xlu0 %v575
        %v577 = vpop.xlane.xlu0 %576
        %v578 = vrot.slane %v577, 4
        %v579 = vadd.f32 %v577, %v578
        %v580 = vrot.slane %v579, 2
        %v581 = vadd.f32 %v579, %v580
        %v582 = vrot.slane %v581, 1
        %v583 = vadd.f32 %v581, %v582
        %s584 = vtos %v583
        %vm585 = vcmp.eq.s32.totalorder %v249, 1
        %vm586 = vmand %vm585, %vm422
        %v587 = vstv %s572
        %v588 = vsel %vm586, %v587, 0.0
        %v589 = vadd.f32 %v431, %v588
        %vm590 = vmand %vm585, %vm427
        %v591 = vstv %s584
        %v592 = vsel %vm590, %v591, 0.0
        %v593 = vadd.f32 %v589, %v592
        %v594 = vld [vmem:[%s216] sm:$0x3]
        %v595 = vadd.f32 %v594, %v593
        %596 = vst [vmem:[%s216] sm:$0x3] %v595
        %s597 = sand.u32 %s114, 1
        %s598 = scalar_lea.sflag [#allocation3], %s597
        %s599 = sand.u32 %s114, 1
        %s600 = smul.addr %s599, 2
        %s601 = scalar_lea.vmem [#allocation2], %s600
        // Predicated region
        $region37: #{tpu_custom_call.1} parent=31 // pred_check
          %p602 = pneg %p124
        $region38: #{tpu_custom_call.1} parent=31 // pred_check_branch
          %604 = sbr.rel (%p602) target = $region40
        $region39: #{tpu_custom_call.1} parent=31 // pred_region
          %606 = vsyncadd %s598, 0
          %s607 = smul.addr %s21, 2
          %s608 = scalar_lea.hbm %s3, %s607
          %s610 = sshll.u32 %s601, 4
          %s611 = int_to_ptr.vmem [resolvable:$true] %s610
          %s612 = sshll.u32 %s608, 4
          %s613 = int_to_ptr.hbm [resolvable:$true] %s612
          %615 = dma.vmem_to_hbm [thread:$0]  %s611, 32, %s613, %s598
        $region40: #{tpu_custom_call.1} parent=31 // pred_fallthru
          _
      $region32: #{tpu_custom_call.1} parent=5 // pred_fallthru
        _
      %p616 = scmp.le.s32.totalorder 2, %s12
      // Predicated region
      $region41: #{tpu_custom_call.1} parent=5 // pred_check
        %p617 = pneg %p616
      $region42: #{tpu_custom_call.1} parent=5 // pred_check_branch
        %619 = sbr.rel (%p617) target = $region44
      $region43: #{tpu_custom_call.1} parent=5 // pred_region
        %s620 = ssub.s32 %s12, 2
        // Predicated region
        $region45: #{tpu_custom_call.1} parent=43 // pred_check
          %p621 = pneg %p130
        $region46: #{tpu_custom_call.1} parent=43 // pred_check_branch
          %623 = sbr.rel (%p621) target = $region48
        $region47: #{tpu_custom_call.1} parent=43 // pred_region
          %s624 = sand.u32 %s115, 1
          %s625 = scalar_lea.sflag [#allocation3], %s624
          %s626 = sand.u32 %s115, 1
          %s627 = smul.addr %s626, 2
          %s628 = scalar_lea.vmem [#allocation2], %s627
          %630 = dma.done %s625, 32
        $region48: #{tpu_custom_call.1} parent=43 // pred_fallthru
          _
      $region44: #{tpu_custom_call.1} parent=5 // pred_fallthru
        _
    $region6: #{tpu_custom_call.1} parent=1 // loop_footer
      %s16 = sadd.s32 1, %s12
    $region7: #{tpu_custom_call.1} parent=1 // loop_footer_branch
      %11 = sbr.rel target = $region3
    $region8: #{tpu_custom_call.1} parent=1 // loop_exit
      _
    %631 = vsyncpa [#allocation3], 1
    %s632 = scalar_lea.sflag [#allocation3], 1
    %633 = vsyncpa %s632, 1

</llo_original>
